<compile_context>
chip_gen: v5e
topology: v5e:2x2
jax: 0.10.0
libtpu: 0.0.40
codegen_flags: <defaults>
</compile_context>

<pallas_src>
import functools

import jax
import jax.numpy as jnp
from jax import lax
from jax.experimental import pallas as pl
from jax.experimental.pallas import tpu as pltpu


def _round_up(x, m):
    return (x + m - 1) // m * m


def _head_kernel(ner_ref, feat_ref, wd_ref, bd_ref, wo_ref, bo_ref, out_ref,
                 pooled_ref, *, tb, seq_len, num_valid):
    """Grid = (num_batch_tiles, tb).

    ner_ref    : SMEM (B, 2) int32   -- scalar-prefetched span bounds
    feat_ref   : VMEM (1, S, H)      -- one batch element's sequence (native dtype)
    wd_ref     : VMEM (H, H)         -- dense weight, PyTorch (out, in) layout
    bd_ref     : VMEM (1, H) f32
    wo_ref     : VMEM (L, H)         -- out_proj weight, PyTorch (out, in) layout
    bo_ref     : VMEM (1, L) f32
    out_ref    : VMEM (tb, L) f32    -- one lane-batched block per batch tile
    pooled_ref : VMEM (tb, H) f32    -- scratch: pooled rows for this tile
    """
    t = pl.program_id(0)
    i = pl.program_id(1)
    # clamp padded tail steps of the last tile to the final real element
    b = jnp.minimum(t * tb + i, num_valid - 1)

    # inclusive span [start, end], clamped to the sequence, empty-span guarded
    start = jnp.maximum(ner_ref[b, 0], 0)
    end = jnp.minimum(ner_ref[b, 1], seq_len - 1)
    end = jnp.maximum(end, start)
    inv_count = 1.0 / (end - start + 1).astype(jnp.float32)

    feats = feat_ref[0]                                   # (S, H), native dtype
    seq = lax.broadcasted_iota(jnp.int32, (1, seq_len), 1)
    mask = ((seq >= start) & (seq <= end)).astype(feats.dtype)        # (1, S)

    # span-sum as a (1,S)@(S,H) matmul on the MXU, accumulated in f32
    pooled = jnp.dot(mask, feats, preferred_element_type=jnp.float32)  # (1, H)
    pooled_ref[pl.ds(i, 1), :] = pooled * inv_count

    @pl.when(i == tb - 1)
    def _():
        x = pooled_ref[...]                               # (tb, H) f32
        # dropout (eval) -> identity
        # dense: contract hidden dim of x with input dim of (out, in) weight
        y = lax.dot_general(x.astype(wd_ref.dtype), wd_ref[...],
                            (((1,), (1,)), ((), ())),
                            preferred_element_type=jnp.float32)
        y = y + bd_ref[...]
        # exact (erf) GELU
        y = 0.5 * y * (1.0 + lax.erf(y * 0.7071067811865476))
        # dropout (eval) -> identity
        z = lax.dot_general(y.astype(wo_ref.dtype), wo_ref[...],
                            (((1,), (1,)), ((), ())),
                            preferred_element_type=jnp.float32)
        out_ref[...] = (z + bo_ref[...]).astype(out_ref.dtype)


@functools.partial(jax.jit, static_argnames=("batch_tile",))
def electra_classification_head_sentiment(features, ner_ids, w_dense, b_dense,
                                          w_out, b_out, *, batch_tile=128):
    """features: (B,S,H) (any float dtype), ner_ids: (B,2) int32,
    w_dense: (H,H) PyTorch layout (out, in), b_dense: (H,),
    w_out: (L,H) PyTorch layout, b_out: (L,).  Returns (B, L) float32."""
    B, S, H = features.shape
    L = w_out.shape[0]

    tb = min(batch_tile, _round_up(B, 8))     # batch-tile rows fed to the MXU
    num_tiles = pl.cdiv(B, tb)
    b_pad = num_tiles * tb

    bd = jnp.asarray(b_dense, jnp.float32).reshape(1, H)
    bo = jnp.asarray(b_out, jnp.float32).reshape(1, L)

    kernel = functools.partial(_head_kernel, tb=tb, seq_len=S, num_valid=B)

    grid_spec = pltpu.PrefetchScalarGridSpec(
        num_scalar_prefetch=1,
        grid=(num_tiles, tb),
        in_specs=[
            # one batch element's sequence per inner step, native dtype
            pl.BlockSpec((1, S, H),
                         lambda t, i, ner: (jnp.minimum(t * tb + i, B - 1), 0, 0)),
            pl.BlockSpec((H, H), lambda t, i, ner: (0, 0)),   # dense W (out,in)
            pl.BlockSpec((1, H), lambda t, i, ner: (0, 0)),   # dense b
            pl.BlockSpec((L, H), lambda t, i, ner: (0, 0)),   # out_proj W (out,in)
            pl.BlockSpec((1, L), lambda t, i, ner: (0, 0)),   # out_proj b
        ],
        out_specs=pl.BlockSpec((tb, L), lambda t, i, ner: (t, 0)),
        scratch_shapes=[pltpu.VMEM((tb, H), jnp.float32)],
    )

    out = pl.pallas_call(
        kernel,
        out_shape=jax.ShapeDtypeStruct((b_pad, L), jnp.float32),
        grid_spec=grid_spec,
        compiler_params=pltpu.CompilerParams(
            dimension_semantics=("parallel", "arbitrary")),
    )(ner_ids.astype(jnp.int32), features, w_dense, bd, w_out, bo)

    return out[:B]


def _reference(features, ner_ids, w_dense, b_dense, w_out, b_out):
    rows = []
    for i in range(features.shape[0]):
        s = int(ner_ids[i, 0])
        e = int(ner_ids[i, 1])
        rows.append(jnp.mean(features[i, s:e + 1, :], axis=0))
    x = jnp.stack(rows).astype(jnp.float32)
    x = x @ w_dense.T.astype(jnp.float32) + b_dense
    x = jax.nn.gelu(x, approximate=False)
    x = x @ w_out.T.astype(jnp.float32) + b_out
    return x


if __name__ == "__main__":
    # config-implied small shapes
    B, S, H, L = 2, 8, 32, 3   # batch, seq, hidden_size, num_labels

    key = jax.random.PRNGKey(0)
    k_feat, k_wd, k_bd, k_wo, k_bo = jax.random.split(key, 5)

    features = jax.random.normal(k_feat, (B, S, H), dtype=jnp.float32)
    ner_ids = jnp.array([[1, 4], [0, 7]], dtype=jnp.int32)   # inclusive spans

    # deterministic synthetic parameters (PyTorch Linear layout: (out, in))
    w_dense = 0.05 * jax.random.normal(k_wd, (H, H), dtype=jnp.float32)
    b_dense = 0.05 * jax.random.normal(k_bd, (H,), dtype=jnp.float32)
    w_out = 0.05 * jax.random.normal(k_wo, (L, H), dtype=jnp.float32)
    b_out = 0.05 * jax.random.normal(k_bo, (L,), dtype=jnp.float32)

    out = electra_classification_head_sentiment(
        features, ner_ids, w_dense, b_dense, w_out, b_out)
    out = jax.block_until_ready(out)

    ref = _reference(features, ner_ids, w_dense, b_dense, w_out, b_out)
    assert out.shape == (B, L), out.shape
    assert jnp.allclose(out, ref, atol=1e-4, rtol=1e-3), (out, ref)

    print("KERNEL_OK")
</pallas_src>

<mosaic_0001>
module attributes {stable_mosaic.version = 11 : i64} {
  func.func @_head_kernel(%arg0: i32, %arg1: i32, %arg2: memref<2x2xi32, #tpu.memory_space<smem>>, %arg3: memref<1x8x32xf32, #tpu.memory_space<vmem>>, %arg4: memref<32x32xf32, #tpu.memory_space<vmem>>, %arg5: memref<1x32xf32, #tpu.memory_space<vmem>>, %arg6: memref<3x32xf32, #tpu.memory_space<vmem>>, %arg7: memref<1x3xf32, #tpu.memory_space<vmem>>, %arg8: memref<8x3xf32, #tpu.memory_space<vmem>>, %arg9: memref<8x32xf32, #tpu.memory_space<vmem>>) attributes {dimension_semantics = [#tpu.dimension_semantics<parallel>, #tpu.dimension_semantics<arbitrary>], iteration_bounds = array<i64: 1, 8>, scalar_prefetch = 1 : i64, scratch_operands = 1 : i64, tpu.core_type = #tpu.core_type<tc>, window_params = [{transform_indices = @transform_0, window_bounds = array<i64: 1, 8, 32>}, {pipeline_mode = #tpu.pipeline_mode<synchronous>, transform_indices = @transform_1, window_bounds = array<i64: 32, 32>}, {pipeline_mode = #tpu.pipeline_mode<synchronous>, transform_indices = @transform_2, window_bounds = array<i64: 1, 32>}, {pipeline_mode = #tpu.pipeline_mode<synchronous>, transform_indices = @transform_3, window_bounds = array<i64: 3, 32>}, {pipeline_mode = #tpu.pipeline_mode<synchronous>, transform_indices = @transform_4, window_bounds = array<i64: 1, 3>}, {transform_indices = @transform_5, window_bounds = array<i64: 8, 3>}]} {
    %c8_i32 = arith.constant 8 : i32
    %0 = arith.muli %arg0, %c8_i32 : i32
    %1 = arith.addi %0, %arg1 : i32
    %c1_i32 = arith.constant 1 : i32
    %2 = arith.minsi %1, %c1_i32 : i32
    %3 = arith.index_cast %2 : i32 to index
    %c0 = arith.constant 0 : index
    %4 = memref.load %arg2[%3, %c0] : memref<2x2xi32, #tpu.memory_space<smem>>
    %c0_i32 = arith.constant 0 : i32
    %5 = arith.maxsi %4, %c0_i32 : i32
    %6 = arith.index_cast %2 : i32 to index
    %c1 = arith.constant 1 : index
    %7 = memref.load %arg2[%6, %c1] : memref<2x2xi32, #tpu.memory_space<smem>>
    %c7_i32 = arith.constant 7 : i32
    %8 = arith.minsi %7, %c7_i32 : i32
    %9 = arith.maxsi %8, %5 : i32
    %10 = arith.subi %9, %5 : i32
    %c1_i32_0 = arith.constant 1 : i32
    %11 = arith.addi %10, %c1_i32_0 : i32
    %12 = arith.sitofp %11 : i32 to f32
    %cst = arith.constant 1.000000e+00 : f32
    %13 = arith.divf %cst, %12 : f32
    %c0_1 = arith.constant 0 : index
    %c0_2 = arith.constant 0 : index
    %c0_3 = arith.constant 0 : index
    %14 = vector.load %arg3[%c0_1, %c0_2, %c0_3] : memref<1x8x32xf32, #tpu.memory_space<vmem>>, vector<1x8x32xf32>
    %15 = vector.shape_cast %14 : vector<1x8x32xf32> to vector<8x32xf32>
    %16 = tpu.iota {dimensions = array<i32: 1>} : vector<1x8xi32>
    %17 = vector.broadcast %5 : i32 to vector<1x8xi32>
    %18 = arith.cmpi sge, %16, %17 : vector<1x8xi32>
    %19 = vector.broadcast %9 : i32 to vector<1x8xi32>
    %20 = arith.cmpi sle, %16, %19 : vector<1x8xi32>
    %21 = arith.andi %18, %20 : vector<1x8xi1>
    %22 = arith.extui %21 : vector<1x8xi1> to vector<1x8xi32>
    %23 = arith.sitofp %22 : vector<1x8xi32> to vector<1x8xf32>
    %cst_4 = arith.constant dense<0.000000e+00> : vector<1x32xf32>
    %24 = tpu.matmul %23, %15, %cst_4 {dimension_numbers = #tpu.dot_dimension_numbers<[1], [0], [0], [1], [0, 0, 1, 1], [], []>} : vector<1x8xf32>, vector<8x32xf32>, vector<1x32xf32> -> vector<1x32xf32>
    %25 = vector.broadcast %13 : f32 to vector<1x32xf32>
    %26 = arith.mulf %24, %25 : vector<1x32xf32>
    %27 = arith.index_cast %arg1 : i32 to index
    %c0_5 = arith.constant 0 : index
    %28 = vector.load %arg9[%27, %c0_5] : memref<8x32xf32, #tpu.memory_space<vmem>>, vector<1x32xf32>
    tpu.vector_store %arg9[%27, %c0_5], %26 {strides = array<i32>} : memref<8x32xf32, #tpu.memory_space<vmem>>, vector<1x32xf32>,
    %c7_i32_6 = arith.constant 7 : i32
    %29 = arith.cmpi eq, %arg1, %c7_i32_6 : i32
    %30 = arith.extui %29 : i1 to i32
    %c0_i32_7 = arith.constant 0 : i32
    %31 = arith.cmpi ne, %30, %c0_i32_7 : i32
    scf.if %31 {
      %c0_8 = arith.constant 0 : index
      %c0_9 = arith.constant 0 : index
      %32 = vector.load %arg9[%c0_8, %c0_9] : memref<8x32xf32, #tpu.memory_space<vmem>>, vector<8x32xf32>
      %c0_10 = arith.constant 0 : index
      %c0_11 = arith.constant 0 : index
      %33 = vector.load %arg4[%c0_10, %c0_11] : memref<32x32xf32, #tpu.memory_space<vmem>>, vector<32x32xf32>
      %cst_12 = arith.constant dense<0.000000e+00> : vector<8x32xf32>
      %34 = tpu.matmul %32, %33, %cst_12 {dimension_numbers = #tpu.dot_dimension_numbers<[1], [1], [0], [0], [0, 0, 1, 0], [], []>} : vector<8x32xf32>, vector<32x32xf32>, vector<8x32xf32> -> vector<8x32xf32>
      %c0_13 = arith.constant 0 : index
      %c0_14 = arith.constant 0 : index
      %35 = vector.load %arg5[%c0_13, %c0_14] : memref<1x32xf32, #tpu.memory_space<vmem>>, vector<1x32xf32>
      %36 = vector.broadcast %35 : vector<1x32xf32> to vector<8x32xf32>
      %37 = arith.addf %34, %36 : vector<8x32xf32>
      %cst_15 = arith.constant 5.000000e-01 : f32
      %38 = vector.broadcast %cst_15 : f32 to vector<8x32xf32>
      %39 = arith.mulf %38, %37 : vector<8x32xf32>
      %cst_16 = arith.constant 0.707106769 : f32
      %40 = vector.broadcast %cst_16 : f32 to vector<8x32xf32>
      %41 = arith.mulf %37, %40 : vector<8x32xf32>
      %42 = math.erf %41 : vector<8x32xf32>
      %cst_17 = arith.constant 1.000000e+00 : f32
      %43 = vector.broadcast %cst_17 : f32 to vector<8x32xf32>
      %44 = arith.addf %43, %42 : vector<8x32xf32>
      %45 = arith.mulf %39, %44 : vector<8x32xf32>
      %c0_18 = arith.constant 0 : index
      %c0_19 = arith.constant 0 : index
      %46 = vector.load %arg6[%c0_18, %c0_19] : memref<3x32xf32, #tpu.memory_space<vmem>>, vector<3x32xf32>
      %cst_20 = arith.constant dense<0.000000e+00> : vector<8x3xf32>
      %47 = tpu.matmul %45, %46, %cst_20 {dimension_numbers = #tpu.dot_dimension_numbers<[1], [1], [0], [0], [0, 0, 1, 0], [], []>} : vector<8x32xf32>, vector<3x32xf32>, vector<8x3xf32> -> vector<8x3xf32>
      %c0_21 = arith.constant 0 : index
      %c0_22 = arith.constant 0 : index
      %48 = vector.load %arg7[%c0_21, %c0_22] : memref<1x3xf32, #tpu.memory_space<vmem>>, vector<1x3xf32>
      %49 = vector.broadcast %48 : vector<1x3xf32> to vector<8x3xf32>
      %50 = arith.addf %47, %49 : vector<8x3xf32>
      %c0_23 = arith.constant 0 : index
      %c0_24 = arith.constant 0 : index
      %51 = vector.load %arg8[%c0_23, %c0_24] : memref<8x3xf32, #tpu.memory_space<vmem>>, vector<8x3xf32>
      tpu.vector_store %arg8[%c0_23, %c0_24], %50 {strides = array<i32>} : memref<8x3xf32, #tpu.memory_space<vmem>>, vector<8x3xf32>,
    } else {
    }
    return
  }
  func.func @transform_0(%arg0: i32, %arg1: i32, %arg2: memref<2x2xi32, #tpu.memory_space<smem>>) -> (i32, i32, i32) {
    %c8_i32 = arith.constant 8 : i32
    %0 = arith.muli %arg0, %c8_i32 : i32
    %1 = arith.addi %0, %arg1 : i32
    %c1_i32 = arith.constant 1 : i32
    %2 = arith.minsi %1, %c1_i32 : i32
    %c0_i32 = arith.constant 0 : i32
    %c0_i32_0 = arith.constant 0 : i32
    %c0_i32_1 = arith.constant 0 : i32
    return %2, %c0_i32, %c0_i32_0 : i32, i32, i32
  }
  func.func @transform_1(%arg0: i32, %arg1: i32, %arg2: memref<2x2xi32, #tpu.memory_space<smem>>) -> (i32, i32) {
    %c0_i32 = arith.constant 0 : i32
    %c0_i32_0 = arith.constant 0 : i32
    %c0_i32_1 = arith.constant 0 : i32
    return %c0_i32, %c0_i32_0 : i32, i32
  }
  func.func @transform_2(%arg0: i32, %arg1: i32, %arg2: memref<2x2xi32, #tpu.memory_space<smem>>) -> (i32, i32) {
    %c0_i32 = arith.constant 0 : i32
    %c0_i32_0 = arith.constant 0 : i32
    %c0_i32_1 = arith.constant 0 : i32
    return %c0_i32, %c0_i32_0 : i32, i32
  }
  func.func @transform_3(%arg0: i32, %arg1: i32, %arg2: memref<2x2xi32, #tpu.memory_space<smem>>) -> (i32, i32) {
    %c0_i32 = arith.constant 0 : i32
    %c0_i32_0 = arith.constant 0 : i32
    %c0_i32_1 = arith.constant 0 : i32
    return %c0_i32, %c0_i32_0 : i32, i32
  }
  func.func @transform_4(%arg0: i32, %arg1: i32, %arg2: memref<2x2xi32, #tpu.memory_space<smem>>) -> (i32, i32) {
    %c0_i32 = arith.constant 0 : i32
    %c0_i32_0 = arith.constant 0 : i32
    %c0_i32_1 = arith.constant 0 : i32
    return %c0_i32, %c0_i32_0 : i32, i32
  }
  func.func @transform_5(%arg0: i32, %arg1: i32, %arg2: memref<2x2xi32, #tpu.memory_space<smem>>) -> (i32, i32) {
    %c0_i32 = arith.constant 0 : i32
    %c0_i32_0 = arith.constant 0 : i32
    return %arg0, %c0_i32 : i32, i32
  }
}

</mosaic_0001>

<llo_original>
// kernel: electra_classification_head_sentiment.1
$region0: #{electra_classification_head_sentiment.1}
  #allocation0 [shape = 'u32[]', space=smem, size = 0x4, offset = 0x4, fixed_abs, tag = 'smem constant byte address 0x4 - core index']
  #allocation1 [shape = 'u32[72,128]{1,0:T(1,128)}', space=vmem, size = 0x9000, scoped, tag = 'internal scratch']
  #allocation2 [shape = 'f32[8,32]{1,0:T(8,128)}', space=vmem, size = 0x1000, scoped, tag = 'scratch operand']
  #allocation3 [shape = 's32[1]{0}', space=sflag, size = 0x4, scoped, tag = 'scoped memory for electra_classification_head_sentiment.1']
  #allocation4 [shape = 'u8[1024]{0}', space=smem, size = 0x400, scoped, tag = 'prefetched SMEM operand 0']
  %s0 = inlined_call_operand.hbm [shape: s32[2,2], index: 0, kind: input, shape index: {}]
  %s1 = inlined_call_operand.hbm [shape: f32[2,8,32], index: 1, kind: input, shape index: {}]
  %s2 = inlined_call_operand.hbm [shape: f32[32,32], index: 2, kind: input, shape index: {}]
  %s3 = inlined_call_operand.vmem [shape: f32[1,32], index: 3, kind: input, shape index: {}]
  %s4 = inlined_call_operand.vmem [shape: f32[3,32], index: 4, kind: input, shape index: {}]
  %s5 = inlined_call_operand.vmem [shape: f32[1,3], index: 5, kind: input, shape index: {}]
  %s6 = inlined_call_operand.vmem [shape: f32[8,3], index: 6, kind: output, shape index: {}]
  %s7 = sld [smem:[#allocation0]]
  $region65: #{electra_classification_head_sentiment.1} parent=0
    _
  %s9 = ssub.s32 1, %s7
  %s10 = scalar_select 0, %s9, %s7
  %s12 = sshll.u32 %s0, 4
  %s13 = int_to_ptr.hbm [resolvable:$true] %s12
  %15 = dma.hbm_to_smem %s13, 32, [#allocation4], [#allocation3]
  %17 = dma.done [#allocation3], 32
  %18 = sfence
  $region1: #{electra_classification_head_sentiment.1} parent=0
    #allocation5 [shape = 'u8[8192]{0}', space=vmem, size = 0x2000, scoped, tag = 'input window, operand 1']
    #allocation6 [shape = 's32[2]{0}', space=sflag, size = 0x8, scoped, tag = 'scoped memory for electra_classification_head_sentiment.1']
    #allocation7 [shape = 'u8[16384]{0}', space=vmem, size = 0x4000, scoped, tag = 'input window, operand 2, single buffered']
    #allocation8 [shape = 's32[1]{0}', space=sflag, size = 0x4, scoped, tag = 'scoped memory for electra_classification_head_sentiment.1']
    %19 = vsyncpa [#allocation6], 0
    %s20 = scalar_lea.sflag [#allocation6], 1
    %21 = vsyncpa %s20, 0
    %22 = vsyncpa [#allocation8], 0
    loop: start=0, step=1, limit=10
    $region2: #{electra_classification_head_sentiment.1} parent=1 // loop_pre_header
      _
    $region3: #{electra_classification_head_sentiment.1} parent=1 // loop_header
      %s24 = sphi 0, %s28
      %p25 = scmp.ge.s32.totalorder %s24, 10
      %s31 = sphi 0, %s43
      %s32 = sphi 0, %s39
      %s33 = sphi 0, %s31
      %s34 = sphi 0, %s32
      %s35 = sphi 0, %s33
      %s36 = sphi 0, %s34
      %s54 = sphi 0, %s56
      %s57 = sphi 0, %s54
      %s58 = sphi 0, %s57
      %s74 = sphi 0, %s58
      %s78 = sphi 0, %s78
      %s80 = sphi 0, %s78
      %s81 = sphi 0, %s80
      %s95 = sphi 0, %s81
      %s99 = sphi 0, %s99
      %s101 = sphi 0, %s99
      %s102 = sphi 0, %s101
      %s116 = sphi 0, %s102
      %s120 = sphi 0, %s120
      %s122 = sphi 0, %s120
      %s123 = sphi 0, %s122
      %s137 = sphi 0, %s123
      %s141 = sphi 0, %s141
      %s143 = sphi 0, %s141
      %s144 = sphi 0, %s143
      %s158 = sphi 0, %s144
      %s164 = sphi 0, %s166
      %s167 = sphi 0, %s164
      %s168 = sphi 0, %s167
      %s184 = sphi 0, %s168
    $region4: #{electra_classification_head_sentiment.1} parent=1 // loop_header_branch
      %27 = sbr.rel (%p25) target = $region8
    $region5: #{electra_classification_head_sentiment.1} parent=1 // loop_body
      %s29 = ssub.s32 %s24, 1
      %s30 = ssub.s32 %s24, 2
      %s37 = sadd.s32 1, %s32
      %p38 = scmp.ge.s32.totalorder %s37, 8
      %s39 = scalar_select %p38, 0, %s37
      %s40 = sadd.s32 1, %s31
      %s41 = scalar_select %p38, %s40, %s31
      %p42 = scmp.ge.s32.totalorder %s41, 1
      %s43 = scalar_select %p42, 0, %s41
      %s44 = smul.u32 %s31, 8
      %s45 = sadd.s32 %s44, %s32
      %p46 = scmp.lt.s32.totalorder %s45, 1
      %s47 = scalar_select %p46, %s45, 1
      %s48 = smul.u32 %s43, 8
      %s49 = sadd.s32 %s48, %s39
      %p50 = scmp.lt.s32.totalorder %s49, 1
      %s51 = scalar_select %p50, %s49, 1
      %s52 = ssub.s32 %s47, %s51
      %p53 = scmp.eq.s32.totalorder %s52, 0
      %s55 = sadd.s32 %s54, 1
      %s56 = scalar_select %p53, %s54, %s55
      %p59 = pneg %p53
      %p60 = scmp.eq.s32.totalorder %s24, 7
      %p61 = por %p59, %p60
      %p62 = scmp.ne.s32.totalorder %s54, %s57
      %p63 = scmp.eq.s32.totalorder %s24, 0
      %p64 = por %p62, %p63
      %p65 = scmp.ne.s32.totalorder %s54, %s57
      %p66 = scmp.eq.s32.totalorder %s29, 7
      %p67 = por %p65, %p66
      %p68 = scmp.ne.s32.totalorder %s57, %s58
      %p69 = scmp.eq.s32.totalorder %s29, 0
      %p70 = por %p68, %p69
      %p71 = scmp.ne.s32.totalorder %s57, %s58
      %p72 = scmp.eq.s32.totalorder %s30, 7
      %p73 = por %p71, %p72
      %p75 = scmp.ne.s32.totalorder %s58, %s74
      %p76 = scmp.eq.s32.totalorder %s30, 0
      %p77 = por %p75, %p76
      %s79 = sadd.s32 %s78, 1
      %p82 = scmp.eq.s32.totalorder %s24, 7
      %p83 = scmp.ne.s32.totalorder %s78, %s80
      %p84 = scmp.eq.s32.totalorder %s24, 0
      %p85 = por %p83, %p84
      %p86 = scmp.ne.s32.totalorder %s78, %s80
      %p87 = scmp.eq.s32.totalorder %s29, 7
      %p88 = por %p86, %p87
      %p89 = scmp.ne.s32.totalorder %s80, %s81
      %p90 = scmp.eq.s32.totalorder %s29, 0
      %p91 = por %p89, %p90
      %p92 = scmp.ne.s32.totalorder %s80, %s81
      %p93 = scmp.eq.s32.totalorder %s30, 7
      %p94 = por %p92, %p93
      %p96 = scmp.ne.s32.totalorder %s81, %s95
      %p97 = scmp.eq.s32.totalorder %s30, 0
      %p98 = por %p96, %p97
      %s100 = sadd.s32 %s99, 1
      %p103 = scmp.eq.s32.totalorder %s24, 7
      %p104 = scmp.ne.s32.totalorder %s99, %s101
      %p105 = scmp.eq.s32.totalorder %s24, 0
      %p106 = por %p104, %p105
      %p107 = scmp.ne.s32.totalorder %s99, %s101
      %p108 = scmp.eq.s32.totalorder %s29, 7
      %p109 = por %p107, %p108
      %p110 = scmp.ne.s32.totalorder %s101, %s102
      %p111 = scmp.eq.s32.totalorder %s29, 0
      %p112 = por %p110, %p111
      %p113 = scmp.ne.s32.totalorder %s101, %s102
      %p114 = scmp.eq.s32.totalorder %s30, 7
      %p115 = por %p113, %p114
      %p117 = scmp.ne.s32.totalorder %s102, %s116
      %p118 = scmp.eq.s32.totalorder %s30, 0
      %p119 = por %p117, %p118
      %s121 = sadd.s32 %s120, 1
      %p124 = scmp.eq.s32.totalorder %s24, 7
      %p125 = scmp.ne.s32.totalorder %s120, %s122
      %p126 = scmp.eq.s32.totalorder %s24, 0
      %p127 = por %p125, %p126
      %p128 = scmp.ne.s32.totalorder %s120, %s122
      %p129 = scmp.eq.s32.totalorder %s29, 7
      %p130 = por %p128, %p129
      %p131 = scmp.ne.s32.totalorder %s122, %s123
      %p132 = scmp.eq.s32.totalorder %s29, 0
      %p133 = por %p131, %p132
      %p134 = scmp.ne.s32.totalorder %s122, %s123
      %p135 = scmp.eq.s32.totalorder %s30, 7
      %p136 = por %p134, %p135
      %p138 = scmp.ne.s32.totalorder %s123, %s137
      %p139 = scmp.eq.s32.totalorder %s30, 0
      %p140 = por %p138, %p139
      %s142 = sadd.s32 %s141, 1
      %p145 = scmp.eq.s32.totalorder %s24, 7
      %p146 = scmp.ne.s32.totalorder %s141, %s143
      %p147 = scmp.eq.s32.totalorder %s24, 0
      %p148 = por %p146, %p147
      %p149 = scmp.ne.s32.totalorder %s141, %s143
      %p150 = scmp.eq.s32.totalorder %s29, 7
      %p151 = por %p149, %p150
      %p152 = scmp.ne.s32.totalorder %s143, %s144
      %p153 = scmp.eq.s32.totalorder %s29, 0
      %p154 = por %p152, %p153
      %p155 = scmp.ne.s32.totalorder %s143, %s144
      %p156 = scmp.eq.s32.totalorder %s30, 7
      %p157 = por %p155, %p156
      %p159 = scmp.ne.s32.totalorder %s144, %s158
      %p160 = scmp.eq.s32.totalorder %s30, 0
      %p161 = por %p159, %p160
      %s162 = ssub.s32 %s31, %s43
      %p163 = scmp.eq.s32.totalorder %s162, 0
      %s165 = sadd.s32 %s164, 1
      %s166 = scalar_select %p163, %s164, %s165
      %p169 = pneg %p163
      %p170 = scmp.eq.s32.totalorder %s24, 7
      %p171 = por %p169, %p170
      %p172 = scmp.ne.s32.totalorder %s164, %s167
      %p173 = scmp.eq.s32.totalorder %s24, 0
      %p174 = por %p172, %p173
      %p175 = scmp.ne.s32.totalorder %s164, %s167
      %p176 = scmp.eq.s32.totalorder %s29, 7
      %p177 = por %p175, %p176
      %p178 = scmp.ne.s32.totalorder %s167, %s168
      %p179 = scmp.eq.s32.totalorder %s29, 0
      %p180 = por %p178, %p179
      %p181 = scmp.ne.s32.totalorder %s167, %s168
      %p182 = scmp.eq.s32.totalorder %s30, 7
      %p183 = por %p181, %p182
      %p185 = scmp.ne.s32.totalorder %s168, %s184
      %p186 = scmp.eq.s32.totalorder %s30, 0
      %p187 = por %p185, %p186
      %p188 = scmp.le.s32.totalorder 1, %s24
      %p189 = scmp.lt.s32.totalorder %s24, 9
      %p190 = pnand %p188, %p189
      %p191 = pneg %p190
      // Predicated region
      $region9: #{electra_classification_head_sentiment.1} parent=5 // pred_check
        _
      $region10: #{electra_classification_head_sentiment.1} parent=5 // pred_check_branch
        %193 = sbr.rel (%p190) target = $region12
      $region11: #{electra_classification_head_sentiment.1} parent=5 // pred_region
        %s194 = ssub.s32 %s24, 1
        // Predicated region
        $region13: #{electra_classification_head_sentiment.1} parent=11 // pred_check
          %p195 = pneg %p91
        $region14: #{electra_classification_head_sentiment.1} parent=11 // pred_check_branch
          %197 = sbr.rel (%p195) target = $region16
        $region15: #{electra_classification_head_sentiment.1} parent=11 // pred_region
          %199 = vsyncadd [#allocation8], 0
          %s200 = sshll.u32 %s2, 4
          %s201 = int_to_ptr.hbm [resolvable:$true] %s200
          %s202 = sshll.u32 [#allocation7], 4
          %s203 = int_to_ptr.vmem [resolvable:$true] %s202
          %208 = dma.hbm_to_vmem [thread:$0]  %s201, 512, %s203, [#allocation8], 128, 128, 8
        $region16: #{electra_classification_head_sentiment.1} parent=11 // pred_fallthru
          _
        // Predicated region
        $region17: #{electra_classification_head_sentiment.1} parent=11 // pred_check
          %p209 = pneg %p112
        $region18: #{electra_classification_head_sentiment.1} parent=11 // pred_check_branch
          %211 = sbr.rel (%p209) target = $region20
        $region19: #{electra_classification_head_sentiment.1} parent=11 // pred_region
          _
        $region20: #{electra_classification_head_sentiment.1} parent=11 // pred_fallthru
          _
        // Predicated region
        $region21: #{electra_classification_head_sentiment.1} parent=11 // pred_check
          %p212 = pneg %p133
        $region22: #{electra_classification_head_sentiment.1} parent=11 // pred_check_branch
          %214 = sbr.rel (%p212) target = $region24
        $region23: #{electra_classification_head_sentiment.1} parent=11 // pred_region
          _
        $region24: #{electra_classification_head_sentiment.1} parent=11 // pred_fallthru
          _
        // Predicated region
        $region25: #{electra_classification_head_sentiment.1} parent=11 // pred_check
          %p215 = pneg %p154
        $region26: #{electra_classification_head_sentiment.1} parent=11 // pred_check_branch
          %217 = sbr.rel (%p215) target = $region28
        $region27: #{electra_classification_head_sentiment.1} parent=11 // pred_region
          _
        $region28: #{electra_classification_head_sentiment.1} parent=11 // pred_fallthru
          _
      $region12: #{electra_classification_head_sentiment.1} parent=5 // pred_fallthru
        _
      %p218 = scmp.lt.s32.totalorder %s24, 8
      // Predicated region
      $region29: #{electra_classification_head_sentiment.1} parent=5 // pred_check
        %p219 = pneg %p218
      $region30: #{electra_classification_head_sentiment.1} parent=5 // pred_check_branch
        %221 = sbr.rel (%p219) target = $region32
      $region31: #{electra_classification_head_sentiment.1} parent=5 // pred_region
        // Predicated region
        $region33: #{electra_classification_head_sentiment.1} parent=31 // pred_check
          %p222 = pneg %p64
        $region34: #{electra_classification_head_sentiment.1} parent=31 // pred_check_branch
          %224 = sbr.rel (%p222) target = $region36
        $region35: #{electra_classification_head_sentiment.1} parent=31 // pred_region
          %s225 = sand.u32 %s54, 1
          %s226 = scalar_lea.sflag [#allocation6], %s225
          %s227 = sand.u32 %s54, 1
          %s228 = smul.addr %s227, 8
          %s229 = scalar_lea.vmem [#allocation5], %s228
          %s230 = smul.u32 %s31, 8
          %s231 = sadd.s32 %s230, %s32
          %p232 = scmp.lt.s32.totalorder %s231, 1
          %s233 = scalar_select %p232, %s231, 1
          %235 = vsyncadd %s226, 0
          %s236 = smul.addr %s233, 8
          %s237 = scalar_lea.hbm %s1, %s236
          %s239 = sshll.u32 %s237, 4
          %s240 = int_to_ptr.hbm [resolvable:$true] %s239
          %s241 = sshll.u32 %s229, 4
          %s242 = int_to_ptr.vmem [resolvable:$true] %s241
          %244 = dma.hbm_to_vmem [thread:$0]  %s240, 128, %s242, %s226
        $region36: #{electra_classification_head_sentiment.1} parent=31 // pred_fallthru
          _
      $region32: #{electra_classification_head_sentiment.1} parent=5 // pred_fallthru
        _
      %p245 = scmp.le.s32.totalorder 1, %s24
      %p246 = scmp.lt.s32.totalorder %s24, 9
      %p247 = pnand %p245, %p246
      %p248 = pneg %p247
      // Predicated region
      $region37: #{electra_classification_head_sentiment.1} parent=5 // pred_check
        _
      $region38: #{electra_classification_head_sentiment.1} parent=5 // pred_check_branch
        %250 = sbr.rel (%p247) target = $region40
      $region39: #{electra_classification_head_sentiment.1} parent=5 // pred_region
        %s251 = ssub.s32 %s24, 1
        %s252 = sand.u32 %s57, 1
        %s253 = scalar_lea.sflag [#allocation6], %s252
        %s254 = sand.u32 %s57, 1
        %s255 = smul.addr %s254, 8
        %s256 = scalar_lea.vmem [#allocation5], %s255
        // Predicated region
        $region41: #{electra_classification_head_sentiment.1} parent=39 // pred_check
          %p257 = pneg %p70
        $region42: #{electra_classification_head_sentiment.1} parent=39 // pred_check_branch
          %259 = sbr.rel (%p257) target = $region44
        $region43: #{electra_classification_head_sentiment.1} parent=39 // pred_region
          %261 = dma.done %s253, 128
        $region44: #{electra_classification_head_sentiment.1} parent=39 // pred_fallthru
          _
        // Predicated region
        $region45: #{electra_classification_head_sentiment.1} parent=39 // pred_check
          %p262 = pneg %p91
        $region46: #{electra_classification_head_sentiment.1} parent=39 // pred_check_branch
          %264 = sbr.rel (%p262) target = $region48
        $region47: #{electra_classification_head_sentiment.1} parent=39 // pred_region
          %266 = dma.done [#allocation8], 512
        $region48: #{electra_classification_head_sentiment.1} parent=39 // pred_fallthru
          _
        %s267 = sand.u32 %s57, 1
        %s268 = scalar_lea.sflag [#allocation6], %s267
        %s269 = sand.u32 %s57, 1
        %s270 = smul.addr %s269, 8
        %s271 = scalar_lea.vmem [#allocation5], %s270
        %p272 = pneg %p70
        %p273 = pneg %p67
        %p274 = pneg %p91
        %p275 = pneg %p88
        %p276 = pneg %p112
        %p277 = pneg %p109
        %p278 = pneg %p133
        %p279 = pneg %p130
        %p280 = pneg %p154
        %p281 = pneg %p151
        %p282 = pneg %p180
        %p283 = pneg %p177
        %p284 = scmp.lt.s32.totalorder %s33, 0
        %s285 = scalar_select %p284, %s33, 0
        %s286 = smul.addr %s285, 8
        %s287 = scalar_lea.vmem %s6, %s286
        %s288 = smul.u32 %s33, 8
        %s289 = sadd.s32 %s288, %s34
        %p290 = scmp.lt.s32.totalorder %s289, 1
        %s291 = scalar_select %p290, %s289, 1
        %p292 = scmp.lt.s32.totalorder %s33, 0
        %s293 = scalar_select %p292, %s33, 0
        %s294 = smul.addr %s293, 8
        %s295 = scalar_lea.vmem %s6, %s294
        %s296 = smul.u32 %s33, 8
        %s297 = sadd.s32 %s296, %s34
        %p298 = scmp.lt.s32.totalorder %s297, 1
        %s299 = scalar_select %p298, %s297, 1
        %s300 = smul.u32 %s299, 128
        %s301 = sld [smem:[#allocation4 + %s300]]
        %p302 = scmp.gt.s32.totalorder %s301, 0
        %s303 = scalar_select %p302, %s301, 0
        %s304 = sadd.s32 %s300, 1
        %s305 = sld [smem:[#allocation4 + %s304]]
        %p306 = scmp.lt.s32.totalorder %s305, 7
        %s307 = scalar_select %p306, %s305, 7
        %p308 = scmp.gt.s32.totalorder %s307, %s303
        %s309 = scalar_select %p308, %s307, %s303
        %s310 = ssub.s32 %s309, %s303
        %s311 = sadd.s32 %s310, 1
        %s312 = scvt.s32.f32 %s311
        %v313 = vstv %s312
        %v314 = vrcp.pop %v313
        %v315 = vmul.f32 %v313, %v314
        %v316 = vsub.f32 1.0, %v315
        %v317 = vmul.f32 %v314, %v316
        %v318 = vadd.f32 %v314, %v317
        %vm319 = vweird.f32 %v313
        %vm320 = vweird.f32 %v314
        %vm321 = vmor %vm319, %vm320
        %v322 = vsel %vm321, %v314, %v318
        %v323 = vand.u32 2147483647, %v313
        %vm324 = vcmp.eq.f32.partialorder %v323, 8.507059e+37
        %v325 = vand.u32 %v313, 2147483648
        %v326 = vor.u32 1.1754944e-38, %v325
        %v327 = vsel %vm324, %v326, %v322
        %s328 = vtos %v327
        %v329 = vld [vmem:[%s256] sm:$0xff]
        %v330 = vlaneseq
        %v331 = vand.u32 %v330, 127
        %v332 = vstv %s303
        %vm333 = vcmp.ge.s32.totalorder %v331, %v332
        %v334 = vstv %s309
        %vm335 = vcmp.le.s32.totalorder %v331, %v334
        %vm336 = vmand %vm333, %vm335
        %v337 = vsel %vm336, 1, 0
        %v338 = vcvt.s32.f32 %v337
        %vm339 = vcmask 64512
        %v341 = vsel %vm339, %v338, 0
        %343 = vmatpush.msra.mxu0 0.0
        %344 = vmatpush.msra.mxu0 0.0
        %345 = vmatpush.msra.mxu0 0.0
        %346 = vmatpush.msra.mxu0 0.0
        %347 = vmatpush.msra.mxu0 0.0
        %348 = vmatpush.msra.mxu0 0.0
        %349 = vmatpush.msra.mxu0 0.0
        %350 = vmatpush.msra.mxu0 0.0
        %351 = vmatpush.msra.mxu0 0.0
        %352 = vmatpush.msra.mxu0 0.0
        %353 = vmatpush.msra.mxu0 0.0
        %354 = vmatpush.msra.mxu0 0.0
        %355 = vmatpush.msra.mxu0 0.0
        %356 = vmatpush.msra.mxu0 0.0
        %357 = vmatpush.msra.mxu0 0.0
        %358 = vmatpush.msra.mxu0 %v329
        %359 = vmatmul.f32.gmra.mxu0 %v341
        %v360 = vpop.f32.mrf.mxu0
        %v361 = vadd.f32 0.0, %v360
        %362 = vdwg.mxu0
        %v363 = vstv %s328
        %v364 = vmul.f32 %v361, %v363
        %s365 = scalar_lea.vmem [#allocation2], %s34
        %vm366 = vcmask 253952
        %367 = vst.msk [vmem:[%s365] sm:$0x1] %vm366, %v364
        %p368 = scmp.eq.s32.totalorder %s34, 7
        // Predicated region
        $region49: #{electra_classification_head_sentiment.1} parent=39 // pred_check
          %p369 = pneg %p368
        $region50: #{electra_classification_head_sentiment.1} parent=39 // pred_check_branch
          %371 = sbr.rel (%p369) target = $region52
        $region51: #{electra_classification_head_sentiment.1} parent=39 // pred_region
          %v372 = vld [vmem:[#allocation2] sm:$0xff]
          %v373 = vld [vmem:[#allocation7] sm:$0xff]
          %v374 = vld [vmem:[#allocation7 + $0x8] sm:$0xff]
          %v375 = vld [vmem:[#allocation7 + $0x10] sm:$0xff]
          %v376 = vld [vmem:[#allocation7 + $0x18] sm:$0xff]
          %v377 = vld [vmem:[%s3] sm:$0x1]
          %v379 = vperm.slane %v377, 0
          %vm381 = vcmask 261120
          %v383 = vsel %vm381, %v372, 0
          %v386 = vsel %vm381, %v373, 0
          %v389 = vsel %vm381, %v374, 0
          %v392 = vsel %vm381, %v375, 0
          %v395 = vsel %vm381, %v376, 0
          %397 = vmatpush.xpose.msra.mxu0 0.0
          %398 = vmatpush.xpose.msra.mxu0 0.0
          %399 = vmatpush.xpose.msra.mxu0 0.0
          %400 = vmatpush.xpose.msra.mxu0 0.0
          %401 = vmatpush.xpose.msra.mxu0 0.0
          %402 = vmatpush.xpose.msra.mxu0 0.0
          %403 = vmatpush.xpose.msra.mxu0 0.0
          %404 = vmatpush.xpose.msra.mxu0 0.0
          %405 = vmatpush.xpose.msra.mxu0 0.0
          %406 = vmatpush.xpose.msra.mxu0 0.0
          %407 = vmatpush.xpose.msra.mxu0 0.0
          %408 = vmatpush.xpose.msra.mxu0 0.0
          %409 = vmatpush.xpose.msra.mxu0 %v395
          %410 = vmatpush.xpose.msra.mxu0 %v392
          %411 = vmatpush.xpose.msra.mxu0 %v389
          %412 = vmatpush.xpose.msra.mxu0 %v386
          %413 = vmatmul.f32.gmra.mxu0 %v383
          %v414 = vpop.f32.mrf.mxu0
          %v415 = vadd.f32 %v379, %v414
          %416 = vdwg.mxu0
          %v417 = vmul.f32 %v415, 0.5
          %v418 = vmul.f32 %v415, 0.70710677
          %v419 = vmul.f32 %v418, %v418
          %v420 = vmin.f32 16.0, %v419
          %v421 = vmul.f32 %v420, 2.1237322e-06
          %v422 = vadd.f32 %v421, 0.00028619796
          %v423 = vmul.f32 %v420, %v422
          %v424 = vadd.f32 %v423, 0.0036580483
          %v425 = vmul.f32 %v420, %v424
          %v426 = vadd.f32 %v425, 0.05243302
          %v427 = vmul.f32 %v420, %v426
          %v428 = vadd.f32 %v427, 0.18741608
          %v429 = vmul.f32 %v420, %v428
          %v430 = vadd.f32 %v429, 1.1283791
          %v431 = vmul.f32 %v418, %v430
          %v432 = vmul.f32 %v420, 3.8918573e-05
          %v433 = vadd.f32 %v432, 0.001143296
          %v434 = vmul.f32 %v420, %v433
          %v435 = vadd.f32 %v434, 0.014752088
          %v436 = vmul.f32 %v420, %v435
          %v437 = vadd.f32 %v436, 0.112945676
          %v438 = vmul.f32 %v420, %v437
          %v439 = vadd.f32 %v438, 0.4994258
          %v440 = vmul.f32 %v420, %v439
          %v441 = vadd.f32 %v440, 1.0
          %v442 = vrcp.pop %v441
          %v443 = vmul.f32 %v441, %v442
          %v444 = vsub.f32 1.0, %v443
          %v445 = vmul.f32 %v442, %v444
          %v446 = vadd.f32 %v442, %v445
          %vm447 = vweird.f32 %v441
          %vm448 = vweird.f32 %v442
          %vm449 = vmor %vm447, %vm448
          %v450 = vsel %vm449, %v442, %v446
          %v451 = vand.u32 2147483647, %v441
          %vm452 = vcmp.eq.f32.partialorder %v451, 8.507059e+37
          %v453 = vand.u32 %v441, 2147483648
          %v454 = vor.u32 1.1754944e-38, %v453
          %v455 = vsel %vm452, %v454, %v450
          %v456 = vmul.f32 %v431, %v455
          %v457 = vmin.f32 %v456, 1.0
          %v458 = vmax.f32 %v457, -1.0
          %v459 = vadd.f32 %v458, 1.0
          %v460 = vmul.f32 %v417, %v459
          %v461 = vld [vmem:[%s4] sm:$0x7]
          %v462 = vld [vmem:[%s5] sm:$0x1]
          %v464 = vperm.slane %v462, 0
          %v467 = vsel %vm381, %v460, 0
          %v470 = vsel %vm381, %v461, 0
          %472 = vmatpush.xpose.msra.mxu0 0.0
          %473 = vmatpush.xpose.msra.mxu0 0.0
          %474 = vmatpush.xpose.msra.mxu0 0.0
          %475 = vmatpush.xpose.msra.mxu0 0.0
          %476 = vmatpush.xpose.msra.mxu0 0.0
          %477 = vmatpush.xpose.msra.mxu0 0.0
          %478 = vmatpush.xpose.msra.mxu0 0.0
          %479 = vmatpush.xpose.msra.mxu0 0.0
          %480 = vmatpush.xpose.msra.mxu0 0.0
          %481 = vmatpush.xpose.msra.mxu0 0.0
          %482 = vmatpush.xpose.msra.mxu0 0.0
          %483 = vmatpush.xpose.msra.mxu0 0.0
          %484 = vmatpush.xpose.msra.mxu0 0.0
          %485 = vmatpush.xpose.msra.mxu0 0.0
          %486 = vmatpush.xpose.msra.mxu0 0.0
          %487 = vmatpush.xpose.msra.mxu0 %v470
          %488 = vmatmul.f32.gmra.mxu0 %v467
          %v489 = vpop.f32.mrf.mxu0
          %v490 = vadd.f32 %v464, %v489
          %491 = vdwg.mxu0
          %vm492 = vcmask 23552
          %493 = vst.msk [vmem:[%s295] sm:$0xff] %vm492, %v490
        $region52: #{electra_classification_head_sentiment.1} parent=39 // pred_fallthru
          _
        %p494 = scmp.lt.s32.totalorder %s33, 0
        %s495 = scalar_select %p494, %s33, 0
        %s496 = smul.addr %s495, 8
        %s497 = scalar_lea.vmem %s6, %s496
        // Predicated region
        $region53: #{electra_classification_head_sentiment.1} parent=39 // pred_check
          %p498 = pneg %p177
        $region54: #{electra_classification_head_sentiment.1} parent=39 // pred_check_branch
          %500 = sbr.rel (%p498) target = $region56
        $region55: #{electra_classification_head_sentiment.1} parent=39 // pred_region
          _
        $region56: #{electra_classification_head_sentiment.1} parent=39 // pred_fallthru
          _
        // Predicated region
        $region57: #{electra_classification_head_sentiment.1} parent=39 // pred_check
          %p501 = pneg %p177
        $region58: #{electra_classification_head_sentiment.1} parent=39 // pred_check_branch
          %503 = sbr.rel (%p501) target = $region60
        $region59: #{electra_classification_head_sentiment.1} parent=39 // pred_region
          %p504 = scmp.lt.s32.totalorder %s33, 0
          %s505 = scalar_select %p504, %s33, 0
          %s506 = smul.addr %s505, 8
          %s507 = scalar_lea.vmem %s6, %s506
        $region60: #{electra_classification_head_sentiment.1} parent=39 // pred_fallthru
          _
      $region40: #{electra_classification_head_sentiment.1} parent=5 // pred_fallthru
        _
      %p508 = scmp.le.s32.totalorder 2, %s24
      // Predicated region
      $region61: #{electra_classification_head_sentiment.1} parent=5 // pred_check
        %p509 = pneg %p508
      $region62: #{electra_classification_head_sentiment.1} parent=5 // pred_check_branch
        %511 = sbr.rel (%p509) target = $region64
      $region63: #{electra_classification_head_sentiment.1} parent=5 // pred_region
        %s512 = ssub.s32 %s24, 2
      $region64: #{electra_classification_head_sentiment.1} parent=5 // pred_fallthru
        _
    $region6: #{electra_classification_head_sentiment.1} parent=1 // loop_footer
      %s28 = sadd.s32 1, %s24
    $region7: #{electra_classification_head_sentiment.1} parent=1 // loop_footer_branch
      %23 = sbr.rel target = $region3
    $region8: #{electra_classification_head_sentiment.1} parent=1 // loop_exit
      _
    %513 = vsyncpa [#allocation6], 1
    %s514 = scalar_lea.sflag [#allocation6], 1
    %515 = vsyncpa %s514, 1
    %516 = vsyncpa [#allocation8], 1

</llo_original>
